<compile_context>
chip_gen: v5e
topology: v5e:2x2
jax: 0.10.0
libtpu: 0.0.40
codegen_flags: <defaults>
</compile_context>

<pallas_src>
import functools

import jax
import jax.numpy as jnp
from jax import lax
from jax.experimental import pallas as pl
from jax.experimental.pallas import tpu as pltpu


# ----------------------------------------------------------------------------
# Pallas kernel: (scale-folded) patch matmul + BN bias epilogue
# ----------------------------------------------------------------------------
def _conv_bn_kernel(w_ref, bias_ref, p_ref, o_ref):
    # w_ref:    [N, K]   bf16  conv weight with BN scale folded in (VMEM-resident)
    # bias_ref: [N, 1]   f32   beta - running_mean * scale          (VMEM-resident)
    # p_ref:    [K, TL]  bf16  patch-matrix lane tile (K = Cin*kh*kw, TL spatial lanes)
    # o_ref:    [N, TL]  out   spatial on lanes -> NCHW output with no transpose pass
    acc = jnp.dot(w_ref[...], p_ref[...], preferred_element_type=jnp.float32)
    o_ref[...] = (acc + bias_ref[...]).astype(o_ref.dtype)


# ----------------------------------------------------------------------------
# Tiling / VMEM helpers
# ----------------------------------------------------------------------------
def _vmem_capacity_bytes():
    try:
        return int(pltpu.get_tpu_info().vmem_capacity_bytes)
    except Exception:
        return 64 * 1024 * 1024          # conservative default (v7x per-TC VMEM)


def _vmem_limit_bytes(need):
    cap = _vmem_capacity_bytes()
    limit = max(int(1.5 * need) + (2 << 20), 16 << 20)
    return int(min(limit, cap // 2))     # never ask for more than ~50% of physical VMEM


def _pick_lane_tile(L, K, N, vmem_budget, min_tiles=1):
    """Largest lane tile (multiple of 128, ideally dividing L) whose double-buffered
    bf16 footprint fits `vmem_budget`; force >= `min_tiles` lane tiles (v7x balance)."""
    if min_tiles <= 1 and L <= 1024:
        return L                                           # full-dim block is always legal
    per_lane = 2 * 2 * (K + N)                             # 2 bufs x bf16 (patch + out) rows
    cap = min(8192,
              max(128, vmem_budget // per_lane),
              max(128, L // max(min_tiles, 1)))
    cap = (cap // 128) * 128
    if cap < 128:
        return L
    best = 0
    for t in range(128, min(L, cap) + 1, 128):
        if L % t == 0:
            best = t                                       # prefer tiles dividing L exactly
    if best >= min(cap, 1024) // 2:
        return best                                        # exact divisor -> no masked edge
    return cap                                             # ragged last tile handled by masking


# ----------------------------------------------------------------------------
# pallas_call launchers (shared kernel body)
# ----------------------------------------------------------------------------
def _pallas_conv_bn_batched(patches_t, w_t, bias, *, lane_tile, out_dtype):
    """patches_t: [B, K, L] bf16 -> out [B, N, L] out_dtype, grid = (B, lane tiles)."""
    B, K, L = patches_t.shape
    N = w_t.shape[0]
    nl = pl.cdiv(L, lane_tile)
    need = (2 * K * lane_tile * 2 + 2 * N * lane_tile * jnp.dtype(out_dtype).itemsize
            + 2 * N * K * 2 + 2 * N * 4)
    grid_spec = pltpu.PrefetchScalarGridSpec(
        num_scalar_prefetch=0,
        grid=(B, nl),
        in_specs=[
            pl.BlockSpec((N, K), lambda b, l: (0, 0)),                   # weights (resident)
            pl.BlockSpec((N, 1), lambda b, l: (0, 0)),                   # bias    (resident)
            pl.BlockSpec((None, K, lane_tile), lambda b, l: (b, 0, l)),  # patch tile
        ],
        out_specs=pl.BlockSpec((None, N, lane_tile), lambda b, l: (b, 0, l)),
    )
    return pl.pallas_call(
        _conv_bn_kernel,
        out_shape=jax.ShapeDtypeStruct((B, N, L), out_dtype),
        grid_spec=grid_spec,
        compiler_params=pltpu.CompilerParams(
            dimension_semantics=("parallel", "parallel"),
            vmem_limit_bytes=_vmem_limit_bytes(need),
        ),
    )(w_t, bias, patches_t)


def _pallas_conv_bn_collapsed(patches_c, w_t, bias, *, lane_tile, out_dtype):
    """patches_c: [K, B*L] bf16 -> out [N, B*L] out_dtype, grid = (lane tiles,)."""
    K, Lt = patches_c.shape
    N = w_t.shape[0]
    nl = pl.cdiv(Lt, lane_tile)
    need = (2 * K * lane_tile * 2 + 2 * N * lane_tile * jnp.dtype(out_dtype).itemsize
            + 2 * N * K * 2 + 2 * N * 4)
    grid_spec = pltpu.PrefetchScalarGridSpec(
        num_scalar_prefetch=0,
        grid=(nl,),
        in_specs=[
            pl.BlockSpec((N, K), lambda l: (0, 0)),             # weights (resident)
            pl.BlockSpec((N, 1), lambda l: (0, 0)),             # bias    (resident)
            pl.BlockSpec((K, lane_tile), lambda l: (0, l)),     # patch tile
        ],
        out_specs=pl.BlockSpec((N, lane_tile), lambda l: (0, l)),
    )
    return pl.pallas_call(
        _conv_bn_kernel,
        out_shape=jax.ShapeDtypeStruct((N, Lt), out_dtype),
        grid_spec=grid_spec,
        compiler_params=pltpu.CompilerParams(
            dimension_semantics=("parallel",),
            vmem_limit_bytes=_vmem_limit_bytes(need),
        ),
    )(w_t, bias, patches_c)


# ----------------------------------------------------------------------------
# Embedding module (functional)
# ----------------------------------------------------------------------------
def init_embedding_params(key, in_chans, embed_dim, patch_size):
    kh, kw = patch_size
    k_w, k_g, k_b, k_m, k_v = jax.random.split(key, 5)
    conv_w = jax.random.normal(k_w, (embed_dim, in_chans, kh, kw), jnp.float32) * 0.05
    bn_gamma = 1.0 + 0.1 * jax.random.normal(k_g, (embed_dim,), jnp.float32)
    bn_beta = 0.1 * jax.random.normal(k_b, (embed_dim,), jnp.float32)
    bn_mean = 0.1 * jax.random.normal(k_m, (embed_dim,), jnp.float32)
    bn_var = jnp.abs(jax.random.normal(k_v, (embed_dim,), jnp.float32)) + 0.5
    return dict(conv_w=conv_w, bn_gamma=bn_gamma, bn_beta=bn_beta,
                bn_mean=bn_mean, bn_var=bn_var)


def _im2col_t(x, kh, kw, sh, sw, ph, pw):
    """x: [B, C, H, W] (bf16) -> patch matrix [B, C*kh*kw, Ho*Wo] (bf16).

    K ordering is C-major, then kh, then kw, matching conv_w.reshape(N, C*kh*kw)."""
    B, C, H, W = x.shape
    x_pad = jnp.pad(x, ((0, 0), (0, 0), (ph, ph), (pw, pw)))
    Ho = (H + 2 * ph - kh) // sh + 1
    Wo = (W + 2 * pw - kw) // sw + 1
    cols = []
    for i in range(kh):
        for j in range(kw):
            cols.append(x_pad[:, :, i:i + Ho * sh:sh, j:j + Wo * sw:sw])  # [B,C,Ho,Wo]
    cols = jnp.stack(cols, axis=2)                      # [B, C, kh*kw, Ho, Wo]
    return cols.reshape(B, C * kh * kw, Ho * Wo), Ho, Wo


@functools.partial(jax.jit, static_argnames=("stride", "padding", "out_dtype"))
def embedding_forward(params, x, stride=(2, 2), padding=(1, 1), out_dtype=jnp.bfloat16):
    """x: [B, C, H, W]  ->  [B, embed_dim, Ho, Wo]  (NCHW, like PyTorch)."""
    conv_w = params["conv_w"]
    N, C, kh, kw = conv_w.shape
    sh, sw = stride
    ph, pw = padding
    eps = 1e-5
    B = x.shape[0]

    # Fold eval-mode BatchNorm into the conv: scale -> weights (then one bf16 cast),
    # bias stays a separate f32 [N, 1] epilogue operand.
    scale = params["bn_gamma"] / jnp.sqrt(params["bn_var"] + eps)
    bias = (params["bn_beta"] - params["bn_mean"] * scale).reshape(N, 1).astype(jnp.float32)
    w_t = (conv_w.reshape(N, C * kh * kw) * scale[:, None]).astype(jnp.bfloat16)   # [N, K]

    # im2col entirely in bf16, directly in the transposed lane-dense layout.
    # TODO(synk): fuse im2col into the kernel (pl.ANY input + manual strided DMA
    # over a halo'd row tile) to remove this patch-matrix HBM round trip.
    patches_t, Ho, Wo = _im2col_t(x.astype(jnp.bfloat16), kh, kw, sh, sw, ph, pw)
    L = Ho * Wo
    K = C * kh * kw
    vmem_budget = _vmem_capacity_bytes() // 4

    if L < 256:
        # Small spatial map: collapse batch into the lane axis so every grid step
        # stores wide, lane-dense rows and the ~0.35us/step overhead amortizes.
        patches_c = patches_t.transpose(1, 0, 2).reshape(K, B * L)          # [K, B*L]
        lane_tile = _pick_lane_tile(B * L, K, N, vmem_budget)
        out = _pallas_conv_bn_collapsed(patches_c, w_t, bias,
                                        lane_tile=lane_tile, out_dtype=out_dtype)  # [N, B*L]
        out = out.reshape(N, B, Ho, Wo).transpose(1, 0, 2, 3)               # [B, N, Ho, Wo]
    else:
        # Large spatial map: big lane tiles over Ho*Wo, grid (B, lane tiles);
        # with B == 1 force >= 2 lane tiles so both v7x TensorCores get work.
        min_tiles = 2 if B == 1 else 1
        lane_tile = _pick_lane_tile(L, K, N, vmem_budget, min_tiles=min_tiles)
        out = _pallas_conv_bn_batched(patches_t, w_t, bias,
                                      lane_tile=lane_tile, out_dtype=out_dtype)    # [B, N, L]
        out = out.reshape(B, N, Ho, Wo)
    return out


# ----------------------------------------------------------------------------
# Reference (pure JAX) for validation — same folded-scale bf16 weight rounding
# and bf16 input rounding as the kernel, f32 accumulation.
# ----------------------------------------------------------------------------
def embedding_reference(params, x, stride=(2, 2), padding=(1, 1)):
    eps = 1e-5
    scale = params["bn_gamma"] / jnp.sqrt(params["bn_var"] + eps)
    bias = params["bn_beta"] - params["bn_mean"] * scale
    w = (params["conv_w"] * scale[:, None, None, None]).astype(jnp.bfloat16).astype(jnp.float32)
    xr = x.astype(jnp.bfloat16).astype(jnp.float32)
    y = lax.conv_general_dilated(
        xr, w, window_strides=stride,
        padding=[(padding[0], padding[0]), (padding[1], padding[1])],
        dimension_numbers=("NCHW", "OIHW", "NCHW"),
        precision=lax.Precision.HIGHEST)
    return y + bias[None, :, None, None]


if __name__ == "__main__":
    key = jax.random.PRNGKey(0)
    k_param, k_x1, k_x2 = jax.random.split(key, 3)

    in_chans, embed_dim = 4, 32
    patch_size, stride, padding = (3, 3), (2, 2), (1, 1)
    params = init_embedding_params(k_param, in_chans, embed_dim, patch_size)

    # Case 1: small spatial map -> collapsed-batch lane layout. [2,4,16,16] -> [2,32,8,8]
    x1 = jax.random.normal(k_x1, (2, in_chans, 16, 16), jnp.float32)
    out1 = jax.block_until_ready(embedding_forward(params, x1, stride=stride, padding=padding))
    ref1 = embedding_reference(params, x1, stride=stride, padding=padding)
    assert out1.shape == (2, embed_dim, 8, 8), out1.shape
    err1 = float(jnp.max(jnp.abs(out1.astype(jnp.float32) - ref1)))
    assert jnp.allclose(out1.astype(jnp.float32), ref1, atol=2e-2, rtol=2e-2), \
        f"case1 mismatch vs reference (max |err|={err1})"

    # Case 2: larger spatial map -> batched lane-tile grid. [2,4,64,64] -> [2,32,32,32]
    x2 = jax.random.normal(k_x2, (2, in_chans, 64, 64), jnp.float32)
    out2 = jax.block_until_ready(embedding_forward(params, x2, stride=stride, padding=padding))
    ref2 = embedding_reference(params, x2, stride=stride, padding=padding)
    assert out2.shape == (2, embed_dim, 32, 32), out2.shape
    err2 = float(jnp.max(jnp.abs(out2.astype(jnp.float32) - ref2)))
    assert jnp.allclose(out2.astype(jnp.float32), ref2, atol=2e-2, rtol=2e-2), \
        f"case2 mismatch vs reference (max |err|={err2})"

    print("KERNEL_OK")
</pallas_src>

<mosaic_0001>
module attributes {stable_mosaic.version = 11 : i64} {
  func.func @_conv_bn_kernel(%arg0: i32, %arg1: memref<32x36xbf16, #tpu.memory_space<vmem>>, %arg2: memref<32x1xf32, #tpu.memory_space<vmem>>, %arg3: memref<36x128xbf16, #tpu.memory_space<vmem>>, %arg4: memref<32x128xbf16, #tpu.memory_space<vmem>>) attributes {dimension_semantics = [#tpu.dimension_semantics<parallel>], iteration_bounds = array<i64: 1>, scalar_prefetch = 0 : i64, scratch_operands = 0 : i64, tpu.core_type = #tpu.core_type<tc>, window_params = [{pipeline_mode = #tpu.pipeline_mode<synchronous>, transform_indices = @transform_0, window_bounds = array<i64: 32, 36>}, {pipeline_mode = #tpu.pipeline_mode<synchronous>, transform_indices = @transform_1, window_bounds = array<i64: 32, 1>}, {transform_indices = @transform_2, window_bounds = array<i64: 36, 128>}, {transform_indices = @transform_3, window_bounds = array<i64: 32, 128>}]} {
    %c0 = arith.constant 0 : index
    %c0_0 = arith.constant 0 : index
    %0 = vector.load %arg1[%c0, %c0_0] : memref<32x36xbf16, #tpu.memory_space<vmem>>, vector<32x36xbf16>
    %c0_1 = arith.constant 0 : index
    %c0_2 = arith.constant 0 : index
    %1 = vector.load %arg3[%c0_1, %c0_2] : memref<36x128xbf16, #tpu.memory_space<vmem>>, vector<36x128xbf16>
    %cst = arith.constant dense<0.000000e+00> : vector<32x128xf32>
    %2 = tpu.matmul %0, %1, %cst {dimension_numbers = #tpu.dot_dimension_numbers<[1], [0], [0], [1], [0, 0, 1, 1], [], []>} : vector<32x36xbf16>, vector<36x128xbf16>, vector<32x128xf32> -> vector<32x128xf32>
    %c0_3 = arith.constant 0 : index
    %c0_4 = arith.constant 0 : index
    %3 = vector.load %arg2[%c0_3, %c0_4] : memref<32x1xf32, #tpu.memory_space<vmem>>, vector<32x1xf32>
    %4 = vector.broadcast %3 : vector<32x1xf32> to vector<32x128xf32>
    %5 = arith.addf %2, %4 : vector<32x128xf32>
    %6 = arith.truncf %5 : vector<32x128xf32> to vector<32x128xbf16>
    %c0_5 = arith.constant 0 : index
    %c0_6 = arith.constant 0 : index
    %7 = vector.load %arg4[%c0_5, %c0_6] : memref<32x128xbf16, #tpu.memory_space<vmem>>, vector<32x128xbf16>
    tpu.vector_store %arg4[%c0_5, %c0_6], %6 {strides = array<i32>} : memref<32x128xbf16, #tpu.memory_space<vmem>>, vector<32x128xbf16>,
    return
  }
  func.func @transform_0(%arg0: i32) -> (i32, i32) {
    %c0_i32 = arith.constant 0 : i32
    %c0_i32_0 = arith.constant 0 : i32
    %c0_i32_1 = arith.constant 0 : i32
    return %c0_i32, %c0_i32_0 : i32, i32
  }
  func.func @transform_1(%arg0: i32) -> (i32, i32) {
    %c0_i32 = arith.constant 0 : i32
    %c0_i32_0 = arith.constant 0 : i32
    %c0_i32_1 = arith.constant 0 : i32
    return %c0_i32, %c0_i32_0 : i32, i32
  }
  func.func @transform_2(%arg0: i32) -> (i32, i32) {
    %c0_i32 = arith.constant 0 : i32
    %c0_i32_0 = arith.constant 0 : i32
    return %c0_i32, %arg0 : i32, i32
  }
  func.func @transform_3(%arg0: i32) -> (i32, i32) {
    %c0_i32 = arith.constant 0 : i32
    %c0_i32_0 = arith.constant 0 : i32
    return %c0_i32, %arg0 : i32, i32
  }
}

</mosaic_0001>

<llo_original>
// kernel: embedding_forward.1
$region0: #{embedding_forward.1}
  #allocation0 [shape = 'u32[]', space=smem, size = 0x4, offset = 0x4, fixed_abs, tag = 'smem constant byte address 0x4 - core index']
  #allocation1 [shape = 'u32[72,128]{1,0:T(1,128)}', space=vmem, size = 0x9000, scoped, tag = 'internal scratch']
  %s0 = inlined_call_operand.vmem [shape: bf16[32,36], index: 0, kind: input, shape index: {}]
  %s1 = inlined_call_operand.vmem [shape: f32[32,1], index: 1, kind: input, shape index: {}]
  %s2 = inlined_call_operand.vmem [shape: bf16[36,128], index: 2, kind: input, shape index: {}]
  %s3 = inlined_call_operand.vmem [shape: bf16[32,128], index: 3, kind: output, shape index: {}]
  %s4 = sld [smem:[#allocation0]]
  $region22: #{embedding_forward.1} parent=0
    _
  %s6 = ssub.s32 1, %s4
  %s7 = scalar_select 0, %s6, %s4
  // Predicated region
  $region2: #{embedding_forward.1} parent=0 // pred_check
    _
  $region3: #{embedding_forward.1} parent=0 // pred_check_branch
    %9 = sbr.rel (0) target = $region5
  $region4: #{embedding_forward.1} parent=0 // pred_region
    _
  $region5: #{embedding_forward.1} parent=0 // pred_fallthru
    _
  // Predicated region
  $region6: #{embedding_forward.1} parent=0 // pred_check
    _
  $region7: #{embedding_forward.1} parent=0 // pred_check_branch
    %11 = sbr.rel (0) target = $region9
  $region8: #{embedding_forward.1} parent=0 // pred_region
    _
  $region9: #{embedding_forward.1} parent=0 // pred_fallthru
    _
  // Predicated region
  $region10: #{embedding_forward.1} parent=0 // pred_check
    _
  $region11: #{embedding_forward.1} parent=0 // pred_check_branch
    %13 = sbr.rel (0) target = $region13
  $region12: #{embedding_forward.1} parent=0 // pred_region
    _
  $region13: #{embedding_forward.1} parent=0 // pred_fallthru
    _
  %v15 = vld [vmem:[%s0] sm:$0xf]
  %v16 = vld [vmem:[%s0 + $0x4] sm:$0xf]
  %v17 = vld [vmem:[%s0 + $0x8] sm:$0xf]
  %v18 = vld [vmem:[%s0 + $0xc] sm:$0xf]
  %v19 = vld [vmem:[%s2] sm:$0xf]
  %v20 = vld [vmem:[%s2 + $0x4] sm:$0xf]
  %v21 = vld [vmem:[%s2 + $0x8] sm:$0xf]
  %v22 = vld [vmem:[%s2 + $0xc] sm:$0xf]
  %v23 = vld [vmem:[%s2 + $0x10] sm:$0x3]
  %v24 = vld [vmem:[%s1] sm:$0xff]
  %v25 = vld [vmem:[%s1 + $0x8] sm:$0xff]
  %v26 = vld [vmem:[%s1 + $0x10] sm:$0xff]
  %v27 = vld [vmem:[%s1 + $0x18] sm:$0xff]
  %29 = vset.pattern.permute.xlu0 0
  %30 = vperm.xlu0 %29, %v24
  %v31 = vpop.permute.xlu0 %30
  %34 = vset.pattern.permute.xlu0 0
  %35 = vperm.xlu0 %34, %v25
  %v36 = vpop.permute.xlu0 %35
  %39 = vset.pattern.permute.xlu0 0
  %40 = vperm.xlu0 %39, %v26
  %v41 = vpop.permute.xlu0 %40
  %44 = vset.pattern.permute.xlu0 0
  %45 = vperm.xlu0 %44, %v27
  %v46 = vpop.permute.xlu0 %45
  %v52 = vunpack.c.l.b16 %v15
  %v53 = vunpack.c.l.b16 %v16
  %v54 = vunpack.c.l.b16 %v17
  %v55 = vunpack.c.l.b16 %v18
  %v56 = vpack.c.b16 %v53, %v52
  %v57 = vpack.c.b16 %v55, %v54
  %v63 = vunpack.c.l.b16 %v19
  %v64 = vunpack.c.l.b16 %v20
  %v65 = vunpack.c.l.b16 %v21
  %v66 = vunpack.c.l.b16 %v22
  %v67 = vunpack.c.l.b16 %v23
  %v68 = vpack.c.b16 %v64, %v63
  %v69 = vpack.c.b16 %v66, %v65
  %v70 = vpack.c.b16 %v67, %v67
  %vm73 = vcmask 293888
  %v75 = vsel %vm73, %v56, 0
  %v78 = vsel %vm73, %v57, 0
  %vm80 = vcmask 1041408
  %v82 = vsel %vm80, %v70, 0
  %84 = vmatpush.bf16.msra.mxu0 0
  %85 = vmatpush.bf16.msra.mxu0 0
  %86 = vmatpush.bf16.msra.mxu0 0
  %87 = vmatpush.bf16.msra.mxu0 0
  %88 = vmatpush.bf16.msra.mxu0 0
  %89 = vmatpush.bf16.msra.mxu0 %v82
  %90 = vmatpush.bf16.msra.mxu0 %v69
  %91 = vmatpush.bf16.msra.mxu0 %v68
  %92 = vmatmul.bf16.gmra.mxu0 %v75
  %v93 = vpop.f32.mrf.mxu0
  %v94 = vadd.f32 %v31, %v93
  %v95 = vpop.f32.mrf.mxu0
  %v96 = vadd.f32 %v36, %v95
  %97 = vmatmul.bf16.gmra.mxu0 %v78
  %v98 = vpop.f32.mrf.mxu0
  %v99 = vadd.f32 %v41, %v98
  %v100 = vpop.f32.mrf.mxu0
  %v101 = vadd.f32 %v46, %v100
  %102 = vdwg.mxu0
  %v103 = vpack.c.bf16 %v94, %v94
  %v104 = vpack.c.bf16 %v96, %v96
  %v105 = vpack.c.bf16 %v99, %v99
  %v106 = vpack.c.bf16 %v101, %v101
  %107 = vst [vmem:[%s3] sm:$0xf] %v103
  %108 = vst [vmem:[%s3 + $0x4] sm:$0xf] %v104
  %109 = vst [vmem:[%s3 + $0x8] sm:$0xf] %v105
  %110 = vst [vmem:[%s3 + $0xc] sm:$0xf] %v106
  // Predicated region
  $region14: #{embedding_forward.1} parent=0 // pred_check
    _
  $region15: #{embedding_forward.1} parent=0 // pred_check_branch
    %112 = sbr.rel (0) target = $region17
  $region16: #{embedding_forward.1} parent=0 // pred_region
    _
  $region17: #{embedding_forward.1} parent=0 // pred_fallthru
    _
  // Predicated region
  $region18: #{embedding_forward.1} parent=0 // pred_check
    _
  $region19: #{embedding_forward.1} parent=0 // pred_check_branch
    %114 = sbr.rel (0) target = $region21
  $region20: #{embedding_forward.1} parent=0 // pred_region
    _
  $region21: #{embedding_forward.1} parent=0 // pred_fallthru
    _

</llo_original>
